<compile_context>
chip_gen: v5e
topology: v5e:2x2
jax: 0.10.0
libtpu: 0.0.40
codegen_flags: <defaults>
</compile_context>

<pallas_src>
import functools

import jax
import jax.numpy as jnp
from jax.experimental import pallas as pl
from jax.experimental.pallas import tpu as pltpu


def _round_up(x, m):
    return ((x + m - 1) // m) * m


def _vae_ctc_kernel(
    # inputs
    x_ref, eps_ref,
    w1_ref, b1_ref,        # fused first layer  (d_in, 5H), (1, 5H)
    w2_ref, b2_ref,        # block-diag second layer (4H, 4H), (1, 4H)
    wz_ref, bz_ref,        # linear_z
    whz_ref, bh_ref,       # hidden (Z part) + hidden bias
    wo_ref, bo_ref,        # output (padded to lane-dense width)
    # outputs
    out_ref,
    *, H,
):
    x = x_ref[...].astype(jnp.bfloat16)       # (tm, d_in)
    eps = eps_ref[...]                         # (1, H) float32 (broadcast rows)

    # ---- fused first layer: [pm1 | ps1 | qm1 | qs1 | hx] ----------------------
    h1 = jnp.dot(x, w1_ref[...], preferred_element_type=jnp.float32) + b1_ref[...]
    branch_h = jnp.maximum(h1[:, : 4 * H], 0.0)   # relu'd hidden of the 4 branches
    x_hx = h1[:, 4 * H:]                          # X @ W_hx (bias/relu added later)

    # ---- fused second layer: block-diag -> [mu_p | sigma_p | mu_q | sigma_q] --
    stats = (
        jnp.dot(branch_h.astype(jnp.bfloat16), w2_ref[...],
                preferred_element_type=jnp.float32)
        + b2_ref[...]
    )                                             # (tm, 4H) float32

    mu_q = stats[:, 2 * H: 3 * H]
    sigma_q = stats[:, 3 * H: 4 * H]

    # Z = mu_q + exp(sigma_q / 2) * epsilon   (epsilon broadcast over rows; EUP exp)
    z = mu_q + jnp.exp(sigma_q * 0.5) * eps

    # tilde_Z = relu(linear_z(Z))
    tilde_z = jnp.maximum(
        jnp.dot(z.astype(jnp.bfloat16), wz_ref[...],
                preferred_element_type=jnp.float32) + bz_ref[...],
        0.0,
    )

    # tilde_X = relu(hidden(cat(X, tilde_Z)))  -- split-weight form of the concat
    hidden = jnp.maximum(
        x_hx
        + jnp.dot(tilde_z.astype(jnp.bfloat16), whz_ref[...],
                  preferred_element_type=jnp.float32)
        + bh_ref[...],
        0.0,
    )

    out = (
        jnp.dot(hidden.astype(jnp.bfloat16), wo_ref[...],
                preferred_element_type=jnp.float32)
        + bo_ref[...]
    )                                             # (tm, d_out_pad) float32

    # Lane-dense slab [mu_p | sigma_p | mu_q | sigma_q | out_pad]; two aligned
    # stores (4H is a multiple of 128 for H=32) instead of a concat copy.
    out_ref[:, 0:4 * H] = stats
    out_ref[:, 4 * H:] = out


def model_vae_ctc_forward(x, eps, params, *, tm=2048):
    """x: (B, T, dim_input) float32. eps: (dim_vae_hidden,) float32."""
    B, T, d_in = x.shape
    H = params["w_z"].shape[0]
    d_out = params["w_o"].shape[1]
    M = B * T

    # Row-tile selection: big tiles for big inputs, clamp + pad for small ones.
    tm_eff = min(tm, _round_up(M, 8))
    M_pad = _round_up(M, tm_eff)
    grid = M_pad // tm_eff

    x2 = x.reshape(M, d_in).astype(jnp.float32)
    if M_pad != M:
        x2 = jnp.pad(x2, ((0, M_pad - M), (0, 0)))
    eps2 = eps.reshape(1, H).astype(jnp.float32)

    # ---- pack weights (layout plumbing done once in the wrapper) --------------
    bf16 = jnp.bfloat16
    zeros_row_H = jnp.zeros((1, H), jnp.float32)

    # fused first-layer weight / bias (hx block gets zero bias; b_h added later)
    w1 = jnp.concatenate(
        [params["w_pm1"], params["w_ps1"], params["w_qm1"], params["w_qs1"],
         params["w_hx"]], axis=1).astype(bf16)                    # (d_in, 5H)
    b1 = jnp.concatenate(
        [params["b_pm1"], params["b_ps1"], params["b_qm1"], params["b_qs1"],
         zeros_row_H], axis=1)                                    # (1, 5H)

    def block_diag(*ws):
        n = len(ws)
        rows = []
        for i, w in enumerate(ws):
            rows.append(jnp.concatenate(
                [w if j == i else jnp.zeros_like(w) for j in range(n)], axis=1))
        return jnp.concatenate(rows, axis=0)

    w2 = block_diag(params["w_pm2"], params["w_ps2"],
                    params["w_qm2"], params["w_qs2"]).astype(bf16)  # (4H, 4H)
    b2 = jnp.concatenate(
        [params["b_pm2"], params["b_ps2"], params["b_qm2"], params["b_qs2"]],
        axis=1)                                                     # (1, 4H)

    wz = params["w_z"].astype(bf16)
    bz = params["b_z"]
    whz = params["w_hz"].astype(bf16)
    bh = params["b_h"]

    d_out_pad = _round_up(d_out, 128)       # lane-dense output block
    wo = jnp.pad(params["w_o"], ((0, 0), (0, d_out_pad - d_out))).astype(bf16)
    bo = jnp.pad(params["b_o"], ((0, 0), (0, d_out_pad - d_out)))

    weight_args = [w1, b1, w2, b2, wz, bz, whz, bh, wo, bo]

    slab_w = 4 * H + d_out_pad

    def rep_spec(a):
        shape = a.shape
        return pl.BlockSpec(shape, lambda i: (0,) * len(shape))

    in_specs = (
        [pl.BlockSpec((tm_eff, d_in), lambda i: (i, 0)),   # x rows
         rep_spec(eps2)]                                   # epsilon (replicated)
        + [rep_spec(w) for w in weight_args]
    )
    out_spec = pl.BlockSpec((tm_eff, slab_w), lambda i: (i, 0))

    slab = pl.pallas_call(
        functools.partial(_vae_ctc_kernel, H=H),
        out_shape=jax.ShapeDtypeStruct((M_pad, slab_w), jnp.float32),
        grid_spec=pltpu.PrefetchScalarGridSpec(
            num_scalar_prefetch=0,
            grid=(grid,),
            in_specs=in_specs,
            out_specs=out_spec,
        ),
        compiler_params=pltpu.CompilerParams(
            dimension_semantics=("parallel",),
            vmem_limit_bytes=32 * 1024 * 1024,
        ),
    )(x2, eps2, *weight_args)

    slab = slab[:M]
    mu_p = slab[:, 0:H]
    sigma_p = slab[:, H:2 * H]
    mu_q = slab[:, 2 * H:3 * H]
    sigma_q = slab[:, 3 * H:4 * H]
    out = slab[:, 4 * H:4 * H + d_out]

    return (
        out.reshape(B, T, d_out),
        mu_p.reshape(B, T, H),
        sigma_p.reshape(B, T, H),
        mu_q.reshape(B, T, H),
        sigma_q.reshape(B, T, H),
    )


def init_params(key, d_in, H, d_out):
    """Deterministic parameter init; weights stored as (in_features, out_features)."""
    ks = jax.random.split(key, 32)
    it = iter(ks)

    def lin(k_in, k_out):
        kw = next(it)
        kb = next(it)
        bound = 1.0 / jnp.sqrt(k_in)
        w = jax.random.uniform(kw, (k_in, k_out), jnp.float32, -bound, bound)
        b = jax.random.uniform(kb, (1, k_out), jnp.float32, -bound, bound)
        return w, b

    p = {}
    p["w_pm1"], p["b_pm1"] = lin(d_in, H)
    p["w_pm2"], p["b_pm2"] = lin(H, H)
    p["w_ps1"], p["b_ps1"] = lin(d_in, H)
    p["w_ps2"], p["b_ps2"] = lin(H, H)
    p["w_qm1"], p["b_qm1"] = lin(d_in, H)
    p["w_qm2"], p["b_qm2"] = lin(H, H)
    p["w_qs1"], p["b_qs1"] = lin(d_in, H)
    p["w_qs2"], p["b_qs2"] = lin(H, H)
    p["w_z"], p["b_z"] = lin(H, H)
    # hidden Linear(d_in + H, H), split into the X part and the Z part
    w_hidden, b_h = lin(d_in + H, H)
    p["w_hx"] = w_hidden[:d_in]
    p["w_hz"] = w_hidden[d_in:]
    p["b_h"] = b_h
    p["w_o"], p["b_o"] = lin(H, d_out)
    return p


def reference_forward(x, eps, p):
    """Plain-JAX f32 reference matching the PyTorch module semantics."""
    def mlp(x_, w1, b1, w2, b2):
        return jnp.maximum(x_ @ w1 + b1, 0.0) @ w2 + b2

    mu_p = mlp(x, p["w_pm1"], p["b_pm1"], p["w_pm2"], p["b_pm2"])
    sigma_p = mlp(x, p["w_ps1"], p["b_ps1"], p["w_ps2"], p["b_ps2"])
    mu_q = mlp(x, p["w_qm1"], p["b_qm1"], p["w_qm2"], p["b_qm2"])
    sigma_q = mlp(x, p["w_qs1"], p["b_qs1"], p["w_qs2"], p["b_qs2"])
    z = mu_q + jnp.exp(sigma_q / 2.0) * eps
    tilde_z = jnp.maximum(z @ p["w_z"] + p["b_z"], 0.0)
    hidden = jnp.maximum(x @ p["w_hx"] + tilde_z @ p["w_hz"] + p["b_h"], 0.0)
    out = hidden @ p["w_o"] + p["b_o"]
    return out, mu_p, sigma_p, mu_q, sigma_q


if __name__ == "__main__":
    B, T = 2, 8
    D_IN, H, D_OUT = 16, 32, 24

    key = jax.random.PRNGKey(0)
    k_x, k_eps, k_p = jax.random.split(key, 3)

    x = jax.random.normal(k_x, (B, T, D_IN), jnp.float32)
    # TODO(synk): torch.randn inside forward() has no reproducible Pallas
    # equivalent; epsilon is drawn once here and passed in (same broadcast
    # semantics: one epsilon vector shared by every (b, t) position).
    eps = jax.random.normal(k_eps, (H,), jnp.float32)
    params = init_params(k_p, D_IN, H, D_OUT)

    outs = model_vae_ctc_forward(x, eps, params)
    outs = jax.block_until_ready(outs)

    refs = reference_forward(x, eps, params)
    # bf16 MXU operands with f32 accumulation -> compare with mixed-precision tolerance.
    for o, r in zip(outs, refs):
        assert o.shape == r.shape, (o.shape, r.shape)
        assert jnp.allclose(o, r, atol=5e-2, rtol=5e-2), float(jnp.max(jnp.abs(o - r)))

    print("KERNEL_OK")
</pallas_src>

<mosaic_0001>
module attributes {stable_mosaic.version = 11 : i64} {
  func.func @_vae_ctc_kernel(%arg0: i32, %arg1: memref<16x16xf32, #tpu.memory_space<vmem>>, %arg2: memref<1x32xf32, #tpu.memory_space<vmem>>, %arg3: memref<16x160xbf16, #tpu.memory_space<vmem>>, %arg4: memref<1x160xf32, #tpu.memory_space<vmem>>, %arg5: memref<128x128xbf16, #tpu.memory_space<vmem>>, %arg6: memref<1x128xf32, #tpu.memory_space<vmem>>, %arg7: memref<32x32xbf16, #tpu.memory_space<vmem>>, %arg8: memref<1x32xf32, #tpu.memory_space<vmem>>, %arg9: memref<32x32xbf16, #tpu.memory_space<vmem>>, %arg10: memref<1x32xf32, #tpu.memory_space<vmem>>, %arg11: memref<32x128xbf16, #tpu.memory_space<vmem>>, %arg12: memref<1x128xf32, #tpu.memory_space<vmem>>, %arg13: memref<16x256xf32, #tpu.memory_space<vmem>>) attributes {dimension_semantics = [#tpu.dimension_semantics<parallel>], iteration_bounds = array<i64: 1>, scalar_prefetch = 0 : i64, scratch_operands = 0 : i64, tpu.core_type = #tpu.core_type<tc>, window_params = [{transform_indices = @transform_0, window_bounds = array<i64: 16, 16>}, {pipeline_mode = #tpu.pipeline_mode<synchronous>, transform_indices = @transform_1, window_bounds = array<i64: 1, 32>}, {pipeline_mode = #tpu.pipeline_mode<synchronous>, transform_indices = @transform_2, window_bounds = array<i64: 16, 160>}, {pipeline_mode = #tpu.pipeline_mode<synchronous>, transform_indices = @transform_3, window_bounds = array<i64: 1, 160>}, {pipeline_mode = #tpu.pipeline_mode<synchronous>, transform_indices = @transform_4, window_bounds = array<i64: 128, 128>}, {pipeline_mode = #tpu.pipeline_mode<synchronous>, transform_indices = @transform_5, window_bounds = array<i64: 1, 128>}, {pipeline_mode = #tpu.pipeline_mode<synchronous>, transform_indices = @transform_6, window_bounds = array<i64: 32, 32>}, {pipeline_mode = #tpu.pipeline_mode<synchronous>, transform_indices = @transform_7, window_bounds = array<i64: 1, 32>}, {pipeline_mode = #tpu.pipeline_mode<synchronous>, transform_indices = @transform_8, window_bounds = array<i64: 32, 32>}, {pipeline_mode = #tpu.pipeline_mode<synchronous>, transform_indices = @transform_9, window_bounds = array<i64: 1, 32>}, {pipeline_mode = #tpu.pipeline_mode<synchronous>, transform_indices = @transform_10, window_bounds = array<i64: 32, 128>}, {pipeline_mode = #tpu.pipeline_mode<synchronous>, transform_indices = @transform_11, window_bounds = array<i64: 1, 128>}, {transform_indices = @transform_12, window_bounds = array<i64: 16, 256>}]} {
    %c0 = arith.constant 0 : index
    %c0_0 = arith.constant 0 : index
    %0 = vector.load %arg1[%c0, %c0_0] : memref<16x16xf32, #tpu.memory_space<vmem>>, vector<16x16xf32>
    %1 = arith.truncf %0 : vector<16x16xf32> to vector<16x16xbf16>
    %c0_1 = arith.constant 0 : index
    %c0_2 = arith.constant 0 : index
    %2 = vector.load %arg2[%c0_1, %c0_2] : memref<1x32xf32, #tpu.memory_space<vmem>>, vector<1x32xf32>
    %c0_3 = arith.constant 0 : index
    %c0_4 = arith.constant 0 : index
    %3 = vector.load %arg3[%c0_3, %c0_4] : memref<16x160xbf16, #tpu.memory_space<vmem>>, vector<16x160xbf16>
    %cst = arith.constant dense<0.000000e+00> : vector<16x160xf32>
    %4 = tpu.matmul %1, %3, %cst {dimension_numbers = #tpu.dot_dimension_numbers<[1], [0], [0], [1], [0, 0, 1, 1], [], []>} : vector<16x16xbf16>, vector<16x160xbf16>, vector<16x160xf32> -> vector<16x160xf32>
    %c0_5 = arith.constant 0 : index
    %c0_6 = arith.constant 0 : index
    %5 = vector.load %arg4[%c0_5, %c0_6] : memref<1x160xf32, #tpu.memory_space<vmem>>, vector<1x160xf32>
    %6 = vector.broadcast %5 : vector<1x160xf32> to vector<16x160xf32>
    %7 = arith.addf %4, %6 : vector<16x160xf32>
    %8 = vector.extract_strided_slice %7 {offsets = [0, 0], sizes = [16, 128], strides = [1, 1]} : vector<16x160xf32> to vector<16x128xf32>
    %cst_7 = arith.constant 0.000000e+00 : f32
    %9 = vector.broadcast %cst_7 : f32 to vector<16x128xf32>
    %10 = arith.maximumf %8, %9 : vector<16x128xf32>
    %11 = vector.extract_strided_slice %7 {offsets = [0, 128], sizes = [16, 32], strides = [1, 1]} : vector<16x160xf32> to vector<16x32xf32>
    %12 = arith.truncf %10 : vector<16x128xf32> to vector<16x128xbf16>
    %c0_8 = arith.constant 0 : index
    %c0_9 = arith.constant 0 : index
    %13 = vector.load %arg5[%c0_8, %c0_9] : memref<128x128xbf16, #tpu.memory_space<vmem>>, vector<128x128xbf16>
    %cst_10 = arith.constant dense<0.000000e+00> : vector<16x128xf32>
    %14 = tpu.matmul %12, %13, %cst_10 {dimension_numbers = #tpu.dot_dimension_numbers<[1], [0], [0], [1], [0, 0, 1, 1], [], []>} : vector<16x128xbf16>, vector<128x128xbf16>, vector<16x128xf32> -> vector<16x128xf32>
    %c0_11 = arith.constant 0 : index
    %c0_12 = arith.constant 0 : index
    %15 = vector.load %arg6[%c0_11, %c0_12] : memref<1x128xf32, #tpu.memory_space<vmem>>, vector<1x128xf32>
    %16 = vector.broadcast %15 : vector<1x128xf32> to vector<16x128xf32>
    %17 = arith.addf %14, %16 : vector<16x128xf32>
    %18 = vector.extract_strided_slice %17 {offsets = [0, 64], sizes = [16, 32], strides = [1, 1]} : vector<16x128xf32> to vector<16x32xf32>
    %19 = vector.extract_strided_slice %17 {offsets = [0, 96], sizes = [16, 32], strides = [1, 1]} : vector<16x128xf32> to vector<16x32xf32>
    %cst_13 = arith.constant 5.000000e-01 : f32
    %20 = vector.broadcast %cst_13 : f32 to vector<16x32xf32>
    %21 = arith.mulf %19, %20 : vector<16x32xf32>
    %22 = math.exp %21 : vector<16x32xf32>
    %23 = vector.broadcast %2 : vector<1x32xf32> to vector<16x32xf32>
    %24 = arith.mulf %22, %23 : vector<16x32xf32>
    %25 = arith.addf %18, %24 : vector<16x32xf32>
    %26 = arith.truncf %25 : vector<16x32xf32> to vector<16x32xbf16>
    %c0_14 = arith.constant 0 : index
    %c0_15 = arith.constant 0 : index
    %27 = vector.load %arg7[%c0_14, %c0_15] : memref<32x32xbf16, #tpu.memory_space<vmem>>, vector<32x32xbf16>
    %cst_16 = arith.constant dense<0.000000e+00> : vector<16x32xf32>
    %28 = tpu.matmul %26, %27, %cst_16 {dimension_numbers = #tpu.dot_dimension_numbers<[1], [0], [0], [1], [0, 0, 1, 1], [], []>} : vector<16x32xbf16>, vector<32x32xbf16>, vector<16x32xf32> -> vector<16x32xf32>
    %c0_17 = arith.constant 0 : index
    %c0_18 = arith.constant 0 : index
    %29 = vector.load %arg8[%c0_17, %c0_18] : memref<1x32xf32, #tpu.memory_space<vmem>>, vector<1x32xf32>
    %30 = vector.broadcast %29 : vector<1x32xf32> to vector<16x32xf32>
    %31 = arith.addf %28, %30 : vector<16x32xf32>
    %cst_19 = arith.constant 0.000000e+00 : f32
    %32 = vector.broadcast %cst_19 : f32 to vector<16x32xf32>
    %33 = arith.maximumf %31, %32 : vector<16x32xf32>
    %34 = arith.truncf %33 : vector<16x32xf32> to vector<16x32xbf16>
    %c0_20 = arith.constant 0 : index
    %c0_21 = arith.constant 0 : index
    %35 = vector.load %arg9[%c0_20, %c0_21] : memref<32x32xbf16, #tpu.memory_space<vmem>>, vector<32x32xbf16>
    %cst_22 = arith.constant dense<0.000000e+00> : vector<16x32xf32>
    %36 = tpu.matmul %34, %35, %cst_22 {dimension_numbers = #tpu.dot_dimension_numbers<[1], [0], [0], [1], [0, 0, 1, 1], [], []>} : vector<16x32xbf16>, vector<32x32xbf16>, vector<16x32xf32> -> vector<16x32xf32>
    %37 = arith.addf %11, %36 : vector<16x32xf32>
    %c0_23 = arith.constant 0 : index
    %c0_24 = arith.constant 0 : index
    %38 = vector.load %arg10[%c0_23, %c0_24] : memref<1x32xf32, #tpu.memory_space<vmem>>, vector<1x32xf32>
    %39 = vector.broadcast %38 : vector<1x32xf32> to vector<16x32xf32>
    %40 = arith.addf %37, %39 : vector<16x32xf32>
    %cst_25 = arith.constant 0.000000e+00 : f32
    %41 = vector.broadcast %cst_25 : f32 to vector<16x32xf32>
    %42 = arith.maximumf %40, %41 : vector<16x32xf32>
    %43 = arith.truncf %42 : vector<16x32xf32> to vector<16x32xbf16>
    %c0_26 = arith.constant 0 : index
    %c0_27 = arith.constant 0 : index
    %44 = vector.load %arg11[%c0_26, %c0_27] : memref<32x128xbf16, #tpu.memory_space<vmem>>, vector<32x128xbf16>
    %cst_28 = arith.constant dense<0.000000e+00> : vector<16x128xf32>
    %45 = tpu.matmul %43, %44, %cst_28 {dimension_numbers = #tpu.dot_dimension_numbers<[1], [0], [0], [1], [0, 0, 1, 1], [], []>} : vector<16x32xbf16>, vector<32x128xbf16>, vector<16x128xf32> -> vector<16x128xf32>
    %c0_29 = arith.constant 0 : index
    %c0_30 = arith.constant 0 : index
    %46 = vector.load %arg12[%c0_29, %c0_30] : memref<1x128xf32, #tpu.memory_space<vmem>>, vector<1x128xf32>
    %47 = vector.broadcast %46 : vector<1x128xf32> to vector<16x128xf32>
    %48 = arith.addf %45, %47 : vector<16x128xf32>
    %c0_31 = arith.constant 0 : index
    %c0_32 = arith.constant 0 : index
    %49 = vector.load %arg13[%c0_31, %c0_32] : memref<16x256xf32, #tpu.memory_space<vmem>>, vector<16x128xf32>
    tpu.vector_store %arg13[%c0_31, %c0_32], %17 {strides = array<i32>} : memref<16x256xf32, #tpu.memory_space<vmem>>, vector<16x128xf32>,
    %c0_33 = arith.constant 0 : index
    %c128 = arith.constant 128 : index
    %50 = vector.load %arg13[%c0_33, %c128] : memref<16x256xf32, #tpu.memory_space<vmem>>, vector<16x128xf32>
    tpu.vector_store %arg13[%c0_33, %c128], %48 {strides = array<i32>} : memref<16x256xf32, #tpu.memory_space<vmem>>, vector<16x128xf32>,
    return
  }
  func.func @transform_0(%arg0: i32) -> (i32, i32) {
    %c0_i32 = arith.constant 0 : i32
    %c0_i32_0 = arith.constant 0 : i32
    return %arg0, %c0_i32 : i32, i32
  }
  func.func @transform_1(%arg0: i32) -> (i32, i32) {
    %c0_i32 = arith.constant 0 : i32
    %c0_i32_0 = arith.constant 0 : i32
    %c0_i32_1 = arith.constant 0 : i32
    return %c0_i32, %c0_i32_0 : i32, i32
  }
  func.func @transform_2(%arg0: i32) -> (i32, i32) {
    %c0_i32 = arith.constant 0 : i32
    %c0_i32_0 = arith.constant 0 : i32
    %c0_i32_1 = arith.constant 0 : i32
    return %c0_i32, %c0_i32_0 : i32, i32
  }
  func.func @transform_3(%arg0: i32) -> (i32, i32) {
    %c0_i32 = arith.constant 0 : i32
    %c0_i32_0 = arith.constant 0 : i32
    %c0_i32_1 = arith.constant 0 : i32
    return %c0_i32, %c0_i32_0 : i32, i32
  }
  func.func @transform_4(%arg0: i32) -> (i32, i32) {
    %c0_i32 = arith.constant 0 : i32
    %c0_i32_0 = arith.constant 0 : i32
    %c0_i32_1 = arith.constant 0 : i32
    return %c0_i32, %c0_i32_0 : i32, i32
  }
  func.func @transform_5(%arg0: i32) -> (i32, i32) {
    %c0_i32 = arith.constant 0 : i32
    %c0_i32_0 = arith.constant 0 : i32
    %c0_i32_1 = arith.constant 0 : i32
    return %c0_i32, %c0_i32_0 : i32, i32
  }
  func.func @transform_6(%arg0: i32) -> (i32, i32) {
    %c0_i32 = arith.constant 0 : i32
    %c0_i32_0 = arith.constant 0 : i32
    %c0_i32_1 = arith.constant 0 : i32
    return %c0_i32, %c0_i32_0 : i32, i32
  }
  func.func @transform_7(%arg0: i32) -> (i32, i32) {
    %c0_i32 = arith.constant 0 : i32
    %c0_i32_0 = arith.constant 0 : i32
    %c0_i32_1 = arith.constant 0 : i32
    return %c0_i32, %c0_i32_0 : i32, i32
  }
  func.func @transform_8(%arg0: i32) -> (i32, i32) {
    %c0_i32 = arith.constant 0 : i32
    %c0_i32_0 = arith.constant 0 : i32
    %c0_i32_1 = arith.constant 0 : i32
    return %c0_i32, %c0_i32_0 : i32, i32
  }
  func.func @transform_9(%arg0: i32) -> (i32, i32) {
    %c0_i32 = arith.constant 0 : i32
    %c0_i32_0 = arith.constant 0 : i32
    %c0_i32_1 = arith.constant 0 : i32
    return %c0_i32, %c0_i32_0 : i32, i32
  }
  func.func @transform_10(%arg0: i32) -> (i32, i32) {
    %c0_i32 = arith.constant 0 : i32
    %c0_i32_0 = arith.constant 0 : i32
    %c0_i32_1 = arith.constant 0 : i32
    return %c0_i32, %c0_i32_0 : i32, i32
  }
  func.func @transform_11(%arg0: i32) -> (i32, i32) {
    %c0_i32 = arith.constant 0 : i32
    %c0_i32_0 = arith.constant 0 : i32
    %c0_i32_1 = arith.constant 0 : i32
    return %c0_i32, %c0_i32_0 : i32, i32
  }
  func.func @transform_12(%arg0: i32) -> (i32, i32) {
    %c0_i32 = arith.constant 0 : i32
    %c0_i32_0 = arith.constant 0 : i32
    return %arg0, %c0_i32 : i32, i32
  }
}

</mosaic_0001>

<llo_original>
// kernel: tpu_custom_call.1
$region0: #{tpu_custom_call.1}
  #allocation0 [shape = 'u32[]', space=smem, size = 0x4, offset = 0x4, fixed_abs, tag = 'smem constant byte address 0x4 - core index']
  #allocation1 [shape = 'u32[72,128]{1,0:T(1,128)}', space=vmem, size = 0x9000, scoped, tag = 'internal scratch']
  %s0 = inlined_call_operand.hbm [shape: f32[16,16], index: 0, kind: input, shape index: {}]
  %s1 = inlined_call_operand.hbm [shape: f32[1,32], index: 1, kind: input, shape index: {}]
  %s2 = inlined_call_operand.hbm [shape: bf16[16,160], index: 2, kind: input, shape index: {}]
  %s3 = inlined_call_operand.vmem [shape: f32[1,160], index: 3, kind: input, shape index: {}]
  %s4 = inlined_call_operand.hbm [shape: bf16[128,128], index: 4, kind: input, shape index: {}]
  %s5 = inlined_call_operand.vmem [shape: f32[1,128], index: 5, kind: input, shape index: {}]
  %s6 = inlined_call_operand.hbm [shape: bf16[32,32], index: 6, kind: input, shape index: {}]
  %s7 = inlined_call_operand.vmem [shape: f32[1,32], index: 7, kind: input, shape index: {}]
  %s8 = inlined_call_operand.hbm [shape: bf16[32,32], index: 8, kind: input, shape index: {}]
  %s9 = inlined_call_operand.vmem [shape: f32[1,32], index: 9, kind: input, shape index: {}]
  %s10 = inlined_call_operand.hbm [shape: bf16[32,128], index: 10, kind: input, shape index: {}]
  %s11 = inlined_call_operand.vmem [shape: f32[1,128], index: 11, kind: input, shape index: {}]
  %s12 = inlined_call_operand.hbm [shape: f32[16,256], index: 12, kind: output, shape index: {}]
  %s13 = sld [smem:[#allocation0]]
  $region86: #{tpu_custom_call.1} parent=0
    _
  %s15 = ssub.s32 1, %s13
  %s16 = scalar_select 0, %s15, %s13
  $region1: #{tpu_custom_call.1} parent=0
    #allocation2 [shape = 'u8[8192]{0}', space=vmem, size = 0x2000, scoped, tag = 'input window, operand 0, single buffered']
    #allocation3 [shape = 's32[1]{0}', space=sflag, size = 0x4, scoped, tag = 'scoped memory for tpu_custom_call.1']
    #allocation4 [shape = 's32[1]{0}', space=sflag, size = 0x4, scoped, tag = 'scoped memory for tpu_custom_call.1']
    #allocation5 [shape = 'u8[512]{0}', space=vmem, size = 0x400, scoped, tag = 'input window, operand 1, single buffered']
    #allocation6 [shape = 's32[1]{0}', space=sflag, size = 0x4, scoped, tag = 'scoped memory for tpu_custom_call.1']
    #allocation7 [shape = 'u8[8192]{0}', space=vmem, size = 0x2000, scoped, tag = 'input window, operand 2, single buffered']
    #allocation8 [shape = 'u8[32768]{0}', space=vmem, size = 0x8000, scoped, tag = 'input window, operand 4, single buffered']
    #allocation9 [shape = 's32[1]{0}', space=sflag, size = 0x4, scoped, tag = 'scoped memory for tpu_custom_call.1']
    #allocation10 [shape = 'u8[8192]{0}', space=vmem, size = 0x2000, scoped, tag = 'input window, operand 6, single buffered']
    #allocation11 [shape = 'u8[8192]{0}', space=vmem, size = 0x2000, scoped, tag = 'input window, operand 8, single buffered']
    #allocation12 [shape = 's32[1]{0}', space=sflag, size = 0x4, scoped, tag = 'scoped memory for tpu_custom_call.1']
    #allocation13 [shape = 'u8[8192]{0}', space=vmem, size = 0x2000, scoped, tag = 'input window, operand 10, single buffered']
    #allocation14 [shape = 'u8[16384]{0}', space=vmem, size = 0x4000, scoped, tag = 'output window, operand 0, single buffered']
    %17 = vsyncpa [#allocation3], 0
    %18 = vsyncpa [#allocation6], 0
    %19 = vsyncpa [#allocation9], 0
    %20 = vsyncpa [#allocation12], 0
    %21 = vsyncpa [#allocation4], 0
    // Predicated region
    $region2: #{tpu_custom_call.1} parent=1 // pred_check
      _
    $region3: #{tpu_custom_call.1} parent=1 // pred_check_branch
      %23 = sbr.rel (0) target = $region5
    $region4: #{tpu_custom_call.1} parent=1 // pred_region
      %25 = vsyncadd [#allocation3], 0
      %s26 = sshll.u32 %s0, 4
      %s27 = int_to_ptr.hbm [resolvable:$true] %s26
      %s28 = sshll.u32 [#allocation2], 4
      %s29 = int_to_ptr.vmem [resolvable:$true] %s28
      %34 = dma.hbm_to_vmem [thread:$0]  %s27, 256, %s29, [#allocation3], 128, 128, 8
    $region5: #{tpu_custom_call.1} parent=1 // pred_fallthru
      _
    // Predicated region
    $region6: #{tpu_custom_call.1} parent=1 // pred_check
      _
    $region7: #{tpu_custom_call.1} parent=1 // pred_check_branch
      %36 = sbr.rel (0) target = $region9
    $region8: #{tpu_custom_call.1} parent=1 // pred_region
      %38 = vsyncadd [#allocation6], 0
      %s40 = sshll.u32 %s1, 4
      %s41 = int_to_ptr.hbm [resolvable:$true] %s40
      %s42 = sshll.u32 [#allocation5], 4
      %s43 = int_to_ptr.vmem [resolvable:$true] %s42
      %45 = dma.hbm_to_vmem [thread:$0]  %s41, 16, %s43, [#allocation6]
    $region9: #{tpu_custom_call.1} parent=1 // pred_fallthru
      _
    // Predicated region
    $region10: #{tpu_custom_call.1} parent=1 // pred_check
      _
    $region11: #{tpu_custom_call.1} parent=1 // pred_check_branch
      %47 = sbr.rel (0) target = $region13
    $region12: #{tpu_custom_call.1} parent=1 // pred_region
      %49 = vsyncadd [#allocation6], 0
      %s50 = sshll.u32 %s2, 4
      %s51 = int_to_ptr.hbm [resolvable:$true] %s50
      %s52 = sshll.u32 [#allocation7], 4
      %s53 = int_to_ptr.vmem [resolvable:$true] %s52
      %58 = dma.hbm_to_vmem [thread:$0]  %s51, 256, %s53, [#allocation6], 128, 128, 8
    $region13: #{tpu_custom_call.1} parent=1 // pred_fallthru
      _
    // Predicated region
    $region14: #{tpu_custom_call.1} parent=1 // pred_check
      _
    $region15: #{tpu_custom_call.1} parent=1 // pred_check_branch
      %60 = sbr.rel (0) target = $region17
    $region16: #{tpu_custom_call.1} parent=1 // pred_region
      _
    $region17: #{tpu_custom_call.1} parent=1 // pred_fallthru
      _
    // Predicated region
    $region18: #{tpu_custom_call.1} parent=1 // pred_check
      _
    $region19: #{tpu_custom_call.1} parent=1 // pred_check_branch
      %62 = sbr.rel (0) target = $region21
    $region20: #{tpu_custom_call.1} parent=1 // pred_region
      %64 = vsyncadd [#allocation9], 0
      %s65 = sshll.u32 %s4, 4
      %s66 = int_to_ptr.hbm [resolvable:$true] %s65
      %s67 = sshll.u32 [#allocation8], 4
      %s68 = int_to_ptr.vmem [resolvable:$true] %s67
      %73 = dma.hbm_to_vmem [thread:$0]  %s66, 1024, %s68, [#allocation9], 64, 64, 4
    $region21: #{tpu_custom_call.1} parent=1 // pred_fallthru
      _
    // Predicated region
    $region22: #{tpu_custom_call.1} parent=1 // pred_check
      _
    $region23: #{tpu_custom_call.1} parent=1 // pred_check_branch
      %75 = sbr.rel (0) target = $region25
    $region24: #{tpu_custom_call.1} parent=1 // pred_region
      _
    $region25: #{tpu_custom_call.1} parent=1 // pred_fallthru
      _
    // Predicated region
    $region26: #{tpu_custom_call.1} parent=1 // pred_check
      _
    $region27: #{tpu_custom_call.1} parent=1 // pred_check_branch
      %77 = sbr.rel (0) target = $region29
    $region28: #{tpu_custom_call.1} parent=1 // pred_region
      %79 = vsyncadd [#allocation9], 0
      %s80 = sshll.u32 %s6, 4
      %s81 = int_to_ptr.hbm [resolvable:$true] %s80
      %s82 = sshll.u32 [#allocation10], 4
      %s83 = int_to_ptr.vmem [resolvable:$true] %s82
      %88 = dma.hbm_to_vmem [thread:$0]  %s81, 256, %s83, [#allocation9], 64, 64, 4
    $region29: #{tpu_custom_call.1} parent=1 // pred_fallthru
      _
    // Predicated region
    $region30: #{tpu_custom_call.1} parent=1 // pred_check
      _
    $region31: #{tpu_custom_call.1} parent=1 // pred_check_branch
      %90 = sbr.rel (0) target = $region33
    $region32: #{tpu_custom_call.1} parent=1 // pred_region
      _
    $region33: #{tpu_custom_call.1} parent=1 // pred_fallthru
      _
    // Predicated region
    $region34: #{tpu_custom_call.1} parent=1 // pred_check
      _
    $region35: #{tpu_custom_call.1} parent=1 // pred_check_branch
      %92 = sbr.rel (0) target = $region37
    $region36: #{tpu_custom_call.1} parent=1 // pred_region
      %94 = vsyncadd [#allocation12], 0
      %s95 = sshll.u32 %s8, 4
      %s96 = int_to_ptr.hbm [resolvable:$true] %s95
      %s97 = sshll.u32 [#allocation11], 4
      %s98 = int_to_ptr.vmem [resolvable:$true] %s97
      %103 = dma.hbm_to_vmem [thread:$0]  %s96, 256, %s98, [#allocation12], 64, 64, 4
    $region37: #{tpu_custom_call.1} parent=1 // pred_fallthru
      _
    // Predicated region
    $region38: #{tpu_custom_call.1} parent=1 // pred_check
      _
    $region39: #{tpu_custom_call.1} parent=1 // pred_check_branch
      %105 = sbr.rel (0) target = $region41
    $region40: #{tpu_custom_call.1} parent=1 // pred_region
      _
    $region41: #{tpu_custom_call.1} parent=1 // pred_fallthru
      _
    // Predicated region
    $region42: #{tpu_custom_call.1} parent=1 // pred_check
      _
    $region43: #{tpu_custom_call.1} parent=1 // pred_check_branch
      %107 = sbr.rel (0) target = $region45
    $region44: #{tpu_custom_call.1} parent=1 // pred_region
      %109 = vsyncadd [#allocation12], 0
      %s110 = sshll.u32 %s10, 4
      %s111 = int_to_ptr.hbm [resolvable:$true] %s110
      %s112 = sshll.u32 [#allocation13], 4
      %s113 = int_to_ptr.vmem [resolvable:$true] %s112
      %118 = dma.hbm_to_vmem [thread:$0]  %s111, 256, %s113, [#allocation12], 64, 64, 4
    $region45: #{tpu_custom_call.1} parent=1 // pred_fallthru
      _
    // Predicated region
    $region46: #{tpu_custom_call.1} parent=1 // pred_check
      _
    $region47: #{tpu_custom_call.1} parent=1 // pred_check_branch
      %120 = sbr.rel (0) target = $region49
    $region48: #{tpu_custom_call.1} parent=1 // pred_region
      _
    $region49: #{tpu_custom_call.1} parent=1 // pred_fallthru
      _
    // Predicated region
    $region50: #{tpu_custom_call.1} parent=1 // pred_check
      _
    $region51: #{tpu_custom_call.1} parent=1 // pred_check_branch
      %122 = sbr.rel (0) target = $region53
    $region52: #{tpu_custom_call.1} parent=1 // pred_region
      %124 = dma.done [#allocation3], 256
    $region53: #{tpu_custom_call.1} parent=1 // pred_fallthru
      _
    // Predicated region
    $region54: #{tpu_custom_call.1} parent=1 // pred_check
      _
    $region55: #{tpu_custom_call.1} parent=1 // pred_check_branch
      %126 = sbr.rel (0) target = $region57
    $region56: #{tpu_custom_call.1} parent=1 // pred_region
      %128 = dma.done [#allocation6], 16
    $region57: #{tpu_custom_call.1} parent=1 // pred_fallthru
      _
    // Predicated region
    $region58: #{tpu_custom_call.1} parent=1 // pred_check
      _
    $region59: #{tpu_custom_call.1} parent=1 // pred_check_branch
      %130 = sbr.rel (0) target = $region61
    $region60: #{tpu_custom_call.1} parent=1 // pred_region
      %132 = dma.done [#allocation6], 256
    $region61: #{tpu_custom_call.1} parent=1 // pred_fallthru
      _
    // Predicated region
    $region62: #{tpu_custom_call.1} parent=1 // pred_check
      _
    $region63: #{tpu_custom_call.1} parent=1 // pred_check_branch
      %134 = sbr.rel (0) target = $region65
    $region64: #{tpu_custom_call.1} parent=1 // pred_region
      %136 = dma.done [#allocation9], 1024
    $region65: #{tpu_custom_call.1} parent=1 // pred_fallthru
      _
    // Predicated region
    $region66: #{tpu_custom_call.1} parent=1 // pred_check
      _
    $region67: #{tpu_custom_call.1} parent=1 // pred_check_branch
      %138 = sbr.rel (0) target = $region69
    $region68: #{tpu_custom_call.1} parent=1 // pred_region
      %140 = dma.done [#allocation9], 256
    $region69: #{tpu_custom_call.1} parent=1 // pred_fallthru
      _
    // Predicated region
    $region70: #{tpu_custom_call.1} parent=1 // pred_check
      _
    $region71: #{tpu_custom_call.1} parent=1 // pred_check_branch
      %142 = sbr.rel (0) target = $region73
    $region72: #{tpu_custom_call.1} parent=1 // pred_region
      %144 = dma.done [#allocation12], 256
    $region73: #{tpu_custom_call.1} parent=1 // pred_fallthru
      _
    // Predicated region
    $region74: #{tpu_custom_call.1} parent=1 // pred_check
      _
    $region75: #{tpu_custom_call.1} parent=1 // pred_check_branch
      %146 = sbr.rel (0) target = $region77
    $region76: #{tpu_custom_call.1} parent=1 // pred_region
      %148 = dma.done [#allocation12], 256
    $region77: #{tpu_custom_call.1} parent=1 // pred_fallthru
      _
    %v150 = vld [vmem:[#allocation2] sm:$0xff]
    %v151 = vld [vmem:[#allocation2 + $0x8] sm:$0xff]
    %v152 = vpack.c.bf16 %v151, %v150
    %v153 = vld [vmem:[#allocation5] sm:$0x1]
    %v154 = vld [vmem:[#allocation7] sm:$0xff]
    %v155 = vld [vmem:[#allocation7 + $0x8] sm:$0xff]
    %v156 = vld [vmem:[%s3] sm:$0x3]
    %v158 = vperm.slane %v156, 0
    %v159 = vperm.slane %v156, 1
    %v164 = vunpack.c.l.b16 %v154
    %v165 = vunpack.c.h.b16 %v154
    %v166 = vunpack.c.l.b16 %v155
    %v167 = vunpack.c.h.b16 %v155
    %v168 = vpack.c.b16 %v166, %v164
    %v169 = vpack.c.b16 %v167, %v165
    %vm172 = vcmask 130048
    %v174 = vsel %vm172, %v152, 0
    %176 = vmatpush.bf16.msra.mxu0 0
    %177 = vmatpush.bf16.msra.mxu0 0
    %178 = vmatpush.bf16.msra.mxu0 0
    %179 = vmatpush.bf16.msra.mxu0 0
    %180 = vmatpush.bf16.msra.mxu0 0
    %181 = vmatpush.bf16.msra.mxu0 0
    %182 = vmatpush.bf16.msra.mxu0 0
    %183 = vmatpush.bf16.msra.mxu0 %v168
    %184 = vmatmul.bf16.gmra.mxu0 %v174
    %v185 = vpop.f32.mrf.mxu0
    %v186 = vadd.f32 %v158, %v185
    %v187 = vpop.f32.mrf.mxu0
    %v188 = vadd.f32 %v158, %v187
    %189 = vdwg.mxu0
    %190 = vmatpush.bf16.msra.mxu0 0
    %191 = vmatpush.bf16.msra.mxu0 0
    %192 = vmatpush.bf16.msra.mxu0 0
    %193 = vmatpush.bf16.msra.mxu0 0
    %194 = vmatpush.bf16.msra.mxu0 0
    %195 = vmatpush.bf16.msra.mxu0 0
    %196 = vmatpush.bf16.msra.mxu0 0
    %197 = vmatpush.bf16.msra.mxu0 %v169
    %198 = vmatmul.bf16.gmra.mxu0 %v174
    %v199 = vpop.f32.mrf.mxu0
    %v200 = vadd.f32 %v159, %v199
    %v201 = vpop.f32.mrf.mxu0
    %v202 = vadd.f32 %v159, %v201
    %203 = vdwg.mxu0
    %v204 = vmax.f32 %v186, 0.0
    %v205 = vmax.f32 %v188, 0.0
    %v206 = vpack.c.bf16 %v205, %v204
    %v207 = vld [vmem:[#allocation8] sm:$0xf]
    %v208 = vld [vmem:[#allocation8 + $0x4] sm:$0xf]
    %v209 = vld [vmem:[#allocation8 + $0x8] sm:$0xf]
    %v210 = vld [vmem:[#allocation8 + $0xc] sm:$0xf]
    %v211 = vld [vmem:[#allocation8 + $0x10] sm:$0xf]
    %v212 = vld [vmem:[#allocation8 + $0x14] sm:$0xf]
    %v213 = vld [vmem:[#allocation8 + $0x18] sm:$0xf]
    %v214 = vld [vmem:[#allocation8 + $0x1c] sm:$0xf]
    %v215 = vld [vmem:[#allocation8 + $0x20] sm:$0xf]
    %v216 = vld [vmem:[#allocation8 + $0x24] sm:$0xf]
    %v217 = vld [vmem:[#allocation8 + $0x28] sm:$0xf]
    %v218 = vld [vmem:[#allocation8 + $0x2c] sm:$0xf]
    %v219 = vld [vmem:[#allocation8 + $0x30] sm:$0xf]
    %v220 = vld [vmem:[#allocation8 + $0x34] sm:$0xf]
    %v221 = vld [vmem:[#allocation8 + $0x38] sm:$0xf]
    %v222 = vld [vmem:[#allocation8 + $0x3c] sm:$0xf]
    %v223 = vld [vmem:[%s5] sm:$0x1]
    %v225 = vperm.slane %v223, 0
    %v243 = vunpack.c.l.b16 %v207
    %v244 = vunpack.c.l.b16 %v208
    %v245 = vunpack.c.l.b16 %v209
    %v246 = vunpack.c.l.b16 %v210
    %v247 = vunpack.c.l.b16 %v211
    %v248 = vunpack.c.l.b16 %v212
    %v249 = vunpack.c.l.b16 %v213
    %v250 = vunpack.c.l.b16 %v214
    %v251 = vunpack.c.l.b16 %v215
    %v252 = vunpack.c.l.b16 %v216
    %v253 = vunpack.c.l.b16 %v217
    %v254 = vunpack.c.l.b16 %v218
    %v255 = vunpack.c.l.b16 %v219
    %v256 = vunpack.c.l.b16 %v220
    %v257 = vunpack.c.l.b16 %v221
    %v258 = vunpack.c.l.b16 %v222
    %v259 = vpack.c.b16 %v244, %v243
    %v260 = vpack.c.b16 %v246, %v245
    %v261 = vpack.c.b16 %v248, %v247
    %v262 = vpack.c.b16 %v250, %v249
    %v263 = vpack.c.b16 %v252, %v251
    %v264 = vpack.c.b16 %v254, %v253
    %v265 = vpack.c.b16 %v256, %v255
    %v266 = vpack.c.b16 %v258, %v257
    %275 = vmatpush.bf16.msra.mxu0 %v266
    %276 = vmatpush.bf16.msra.mxu0 %v265
    %277 = vmatpush.bf16.msra.mxu0 %v264
    %278 = vmatpush.bf16.msra.mxu0 %v263
    %279 = vmatpush.bf16.msra.mxu0 %v262
    %280 = vmatpush.bf16.msra.mxu0 %v261
    %281 = vmatpush.bf16.msra.mxu0 %v260
    %282 = vmatpush.bf16.msra.mxu0 %v259
    %283 = vmatmul.bf16.gmra.mxu0 %v206
    %v284 = vpop.f32.mrf.mxu0
    %v285 = vadd.f32 %v225, %v284
    %v286 = vpop.f32.mrf.mxu0
    %v287 = vadd.f32 %v225, %v286
    %288 = vdwg.mxu0
    %v289 = vmul.f32 %v285, 0.5
    %v290 = vmul.f32 %v287, 0.5
    %v291 = vmul.f32 %v289, 1.442695
    %v292 = vpow.pop %v291
    %v293 = vmul.f32 %v290, 1.442695
    %v294 = vpow.pop %v293
    %v296 = vperm.slane %v153, 0
    %297 = vrot.lane.b32.xlu0 %v296, 96
    %v298 = vpop.permute.xlu0 %297
    %v300 = vmul.f32 %v292, %v298
    %v301 = vmul.f32 %v294, %v298
    %304 = vrot.lane.b32.xlu0 %v300, 96
    %v305 = vpop.permute.xlu0 %304
    %306 = vrot.lane.b32.xlu0 %v301, 96
    %v307 = vpop.permute.xlu0 %306
    %v310 = vadd.f32 %v285, %v305
    %v311 = vadd.f32 %v287, %v307
    %v312 = vpack.c.bf16 %v311, %v310
    %v313 = vld [vmem:[#allocation10] sm:$0xf]
    %v314 = vld [vmem:[#allocation10 + $0x4] sm:$0xf]
    %v315 = vld [vmem:[#allocation10 + $0x8] sm:$0xf]
    %v316 = vld [vmem:[#allocation10 + $0xc] sm:$0xf]
    %v317 = vld [vmem:[%s7] sm:$0x1]
    %v319 = vperm.slane %v317, 0
    %322 = vrot.lane.b32.xlu0 %v312, 64
    %v323 = vpop.permute.xlu0 %322
    %v328 = vunpack.c.l.b16 %v313
    %v329 = vunpack.c.l.b16 %v314
    %v330 = vunpack.c.l.b16 %v315
    %v331 = vunpack.c.l.b16 %v316
    %v332 = vpack.c.b16 %v329, %v328
    %v333 = vpack.c.b16 %v331, %v330
    %vm336 = vcmask 261120
    %v338 = vsel %vm336, %v323, 0
    %340 = vmatpush.bf16.msra.mxu0 0
    %341 = vmatpush.bf16.msra.mxu0 0
    %342 = vmatpush.bf16.msra.mxu0 0
    %343 = vmatpush.bf16.msra.mxu0 0
    %344 = vmatpush.bf16.msra.mxu0 0
    %345 = vmatpush.bf16.msra.mxu0 0
    %346 = vmatpush.bf16.msra.mxu0 %v333
    %347 = vmatpush.bf16.msra.mxu0 %v332
    %348 = vmatmul.bf16.gmra.mxu0 %v338
    %v349 = vpop.f32.mrf.mxu0
    %v350 = vadd.f32 %v319, %v349
    %v351 = vpop.f32.mrf.mxu0
    %v352 = vadd.f32 %v319, %v351
    %353 = vdwg.mxu0
    %v354 = vmax.f32 %v350, 0.0
    %v355 = vmax.f32 %v352, 0.0
    %v356 = vpack.c.bf16 %v355, %v354
    %v357 = vld [vmem:[#allocation11] sm:$0xf]
    %v358 = vld [vmem:[#allocation11 + $0x4] sm:$0xf]
    %v359 = vld [vmem:[#allocation11 + $0x8] sm:$0xf]
    %v360 = vld [vmem:[#allocation11 + $0xc] sm:$0xf]
    %v365 = vunpack.c.l.b16 %v357
    %v366 = vunpack.c.l.b16 %v358
    %v367 = vunpack.c.l.b16 %v359
    %v368 = vunpack.c.l.b16 %v360
    %v369 = vpack.c.b16 %v366, %v365
    %v370 = vpack.c.b16 %v368, %v367
    %v374 = vsel %vm336, %v356, 0
    %376 = vmatpush.bf16.msra.mxu0 0
    %377 = vmatpush.bf16.msra.mxu0 0
    %378 = vmatpush.bf16.msra.mxu0 0
    %379 = vmatpush.bf16.msra.mxu0 0
    %380 = vmatpush.bf16.msra.mxu0 0
    %381 = vmatpush.bf16.msra.mxu0 0
    %382 = vmatpush.bf16.msra.mxu0 %v370
    %383 = vmatpush.bf16.msra.mxu0 %v369
    %384 = vmatmul.bf16.gmra.mxu0 %v374
    %v385 = vpop.f32.mrf.mxu0
    %v386 = vadd.f32 0.0, %v385
    %v387 = vpop.f32.mrf.mxu0
    %v388 = vadd.f32 0.0, %v387
    %389 = vdwg.mxu0
    %v390 = vadd.f32 %v200, %v386
    %v391 = vadd.f32 %v202, %v388
    %v392 = vld [vmem:[%s9] sm:$0x1]
    %v394 = vperm.slane %v392, 0
    %v396 = vadd.f32 %v390, %v394
    %v397 = vadd.f32 %v391, %v394
    %v398 = vmax.f32 %v396, 0.0
    %v399 = vmax.f32 %v397, 0.0
    %v400 = vpack.c.bf16 %v399, %v398
    %v401 = vld [vmem:[#allocation13] sm:$0xf]
    %v402 = vld [vmem:[#allocation13 + $0x4] sm:$0xf]
    %v403 = vld [vmem:[#allocation13 + $0x8] sm:$0xf]
    %v404 = vld [vmem:[#allocation13 + $0xc] sm:$0xf]
    %v405 = vld [vmem:[%s11] sm:$0x1]
    %v407 = vperm.slane %v405, 0
    %v413 = vunpack.c.l.b16 %v401
    %v414 = vunpack.c.l.b16 %v402
    %v415 = vunpack.c.l.b16 %v403
    %v416 = vunpack.c.l.b16 %v404
    %v417 = vpack.c.b16 %v414, %v413
    %v418 = vpack.c.b16 %v416, %v415
    %v422 = vsel %vm336, %v400, 0
    %424 = vmatpush.bf16.msra.mxu0 0
    %425 = vmatpush.bf16.msra.mxu0 0
    %426 = vmatpush.bf16.msra.mxu0 0
    %427 = vmatpush.bf16.msra.mxu0 0
    %428 = vmatpush.bf16.msra.mxu0 0
    %429 = vmatpush.bf16.msra.mxu0 0
    %430 = vmatpush.bf16.msra.mxu0 %v418
    %431 = vmatpush.bf16.msra.mxu0 %v417
    %432 = vmatmul.bf16.gmra.mxu0 %v422
    %v433 = vpop.f32.mrf.mxu0
    %v434 = vadd.f32 %v407, %v433
    %v435 = vpop.f32.mrf.mxu0
    %v436 = vadd.f32 %v407, %v435
    %437 = vdwg.mxu0
    %438 = vst [vmem:[#allocation14] sm:$0xff] %v285
    %439 = vst [vmem:[#allocation14 + $0x10] sm:$0xff] %v287
    %440 = vst [vmem:[#allocation14 + $0x8] sm:$0xff] %v434
    %441 = vst [vmem:[#allocation14 + $0x18] sm:$0xff] %v436
    // Predicated region
    $region78: #{tpu_custom_call.1} parent=1 // pred_check
      _
    $region79: #{tpu_custom_call.1} parent=1 // pred_check_branch
      %443 = sbr.rel (0) target = $region81
    $region80: #{tpu_custom_call.1} parent=1 // pred_region
      %445 = vsyncadd [#allocation4], 0
      %s446 = sshll.u32 [#allocation14], 4
      %s447 = int_to_ptr.vmem [resolvable:$true] %s446
      %s448 = sshll.u32 %s12, 4
      %s449 = int_to_ptr.hbm [resolvable:$true] %s448
      %454 = dma.vmem_to_hbm [thread:$0]  %s447, 512, %s449, [#allocation4], 256, 256, 16
    $region81: #{tpu_custom_call.1} parent=1 // pred_fallthru
      _
    // Predicated region
    $region82: #{tpu_custom_call.1} parent=1 // pred_check
      _
    $region83: #{tpu_custom_call.1} parent=1 // pred_check_branch
      %456 = sbr.rel (0) target = $region85
    $region84: #{tpu_custom_call.1} parent=1 // pred_region
      %458 = dma.done [#allocation4], 512
    $region85: #{tpu_custom_call.1} parent=1 // pred_fallthru
      _
    %459 = vsyncpa [#allocation3], 1
    %460 = vsyncpa [#allocation6], 1
    %461 = vsyncpa [#allocation9], 1
    %462 = vsyncpa [#allocation12], 1
    %463 = vsyncpa [#allocation4], 1

</llo_original>
